<compile_context>
chip_gen: v7x
topology: tpu7x:2x2x1
jax: 0.10.0
libtpu: 0.0.40
codegen_flags: <defaults>
</compile_context>

<pallas_src>
import math

import numpy as np
import jax
import jax.numpy as jnp
from jax.experimental import pallas as pl
from jax.experimental.pallas import tpu as pltpu

_LANES = 128


def _round_up(x, m):
    return ((x + m - 1) // m) * m


# ----------------------------------------------------------------------------
# Dir_Gen: constant direction-prior map (host-side numpy, it is a module buffer).
# ----------------------------------------------------------------------------
def dir_gen(dir_id, k):
    ones_row = np.ones((1, k), dtype=np.int64)
    if dir_id == "1":
        ch = ones_row.reshape(1, k, 1) @ np.arange(k, dtype=np.int64).reshape(1, 1, k)
        ch = ch[None]                                   # (1, 1, k, k)
    elif dir_id == "2":
        rng = np.arange(k - 1, -1, -1, dtype=np.int64).reshape(1, 1, k)
        ch = (ones_row.reshape(1, k, 1) @ rng)[None]
    elif dir_id == "3":
        rng = np.arange(k, dtype=np.int64).reshape(1, k, 1)
        ch = (rng @ ones_row.reshape(1, 1, k))[None]
    elif dir_id == "4":
        rng = np.arange(k - 1, -1, -1, dtype=np.int64).reshape(1, k, 1)
        ch = (rng @ ones_row.reshape(1, 1, k))[None]
    elif dir_id == "5":
        a = np.triu(np.ones((k, k), dtype=np.int64))
        b = np.ones((k, k), dtype=np.int64)
        b[k - 1, :] = np.arange(k - 1, -1, -1, dtype=np.int64)
        ch = (a @ b)[None, None]
    elif dir_id == "6":
        a = np.triu(np.ones((k, k), dtype=np.int64)).T
        b = np.ones((k, k), dtype=np.int64)
        b[0, :] = np.arange(k, dtype=np.int64)
        ch = (a @ b)[None, None]
    elif dir_id == "7":
        a = np.triu(np.ones((k, k), dtype=np.int64))
        b = np.ones((k, k), dtype=np.int64)
        b[k - 1, :] = np.arange(k, dtype=np.int64)
        ch = (a @ b)[None, None]
    elif dir_id == "8":
        a = np.triu(np.ones((k, k), dtype=np.int64)).T
        b = np.ones((k, k), dtype=np.int64)
        b[0, :] = np.arange(k - 1, -1, -1, dtype=np.int64)
        ch = (a @ b)[None, None]
    else:
        raise ValueError(f"unknown dir_id {dir_id!r}")
    ch = ch.astype(np.float32) / float(ch.max())
    return (ch * 2.0 - 1.0).astype(np.float32)          # (1, 1, k, k)


# ----------------------------------------------------------------------------
# Pallas kernel: fused  out = w2 @ relu(w1 * pos + b1) + b2
#   pos_ref : (1, tm)        f32   spatial tile (lanes)
#   w1_ref  : (MIDP, 1)      f32   l1 weight column (1x1 conv, Cin=1)
#   b1_ref  : (MIDP, 1)      f32
#   w2t_ref : (CP, MIDP)     bf16  l2 weight, transposed, zero-padded
#   b2_ref  : (CP, 1)        f32
#   o_ref   : (CP, tm)       f32   channels on sublanes, spatial on lanes
# ----------------------------------------------------------------------------
def _dirprior_kernel(pos_ref, w1_ref, b1_ref, w2t_ref, b2_ref, o_ref):
    # Layer 1 (Cin == 1): outer broadcast + bias + ReLU on the VPU.
    h = jnp.maximum(w1_ref[...] * pos_ref[...] + b1_ref[...], 0.0)      # (MIDP, tm) f32
    # Layer 2 on the MXU: bf16 operands, f32 accumulation.
    acc = jnp.dot(w2t_ref[...], h.astype(jnp.bfloat16),
                  preferred_element_type=jnp.float32)                   # (CP, tm) f32
    o_ref[...] = acc + b2_ref[...]


def dirprior_fused(pos_flat, w1, b1, w2, b2, *, block_m=128):
    """pos_flat: (M,). w1:(mid,1,1,1), b1:(mid,), w2:(C,mid,1,1), b2:(C,).
    Returns (C, M) = l2(relu(l1(pos)))."""
    M = pos_flat.shape[0]
    mid = w1.shape[0]
    C = w2.shape[0]

    Mp = _round_up(M, block_m)                    # spatial padded to tile multiple
    MIDP = _round_up(max(mid, _LANES), _LANES)    # hidden channels -> lane-dense K
    CP = _round_up(max(C, _LANES), _LANES)        # output channels -> lane-dense rows

    pos_row = jnp.zeros((1, Mp), jnp.float32).at[0, :M].set(pos_flat.astype(jnp.float32))
    w1_col = jnp.zeros((MIDP, 1), jnp.float32).at[:mid, 0].set(
        w1.reshape(mid).astype(jnp.float32))
    b1_col = jnp.zeros((MIDP, 1), jnp.float32).at[:mid, 0].set(b1.astype(jnp.float32))
    w2t = jnp.zeros((CP, MIDP), jnp.float32).at[:C, :mid].set(
        w2.reshape(C, mid).astype(jnp.float32)).astype(jnp.bfloat16)
    b2_col = jnp.zeros((CP, 1), jnp.float32).at[:C, 0].set(b2.astype(jnp.float32))

    grid = (Mp // block_m,)
    out_pad = pl.pallas_call(
        _dirprior_kernel,
        out_shape=jax.ShapeDtypeStruct((CP, Mp), jnp.float32),
        grid=grid,
        in_specs=[
            pl.BlockSpec((1, block_m), lambda i: (0, i)),      # pos tile
            pl.BlockSpec((MIDP, 1), lambda i: (0, 0)),         # w1 (resident)
            pl.BlockSpec((MIDP, 1), lambda i: (0, 0)),         # b1 (resident)
            pl.BlockSpec((CP, MIDP), lambda i: (0, 0)),        # w2^T (resident)
            pl.BlockSpec((CP, 1), lambda i: (0, 0)),           # b2 (resident)
        ],
        out_specs=pl.BlockSpec((CP, block_m), lambda i: (0, i)),
        compiler_params=pltpu.CompilerParams(
            dimension_semantics=("parallel",),                 # v7x: split tiles over TCs
            vmem_limit_bytes=32 * 1024 * 1024,
        ),
    )(pos_row, w1_col, b1_col, w2t, b2_col)
    return out_pad[:C, :M]


# ----------------------------------------------------------------------------
# DirPrior module: params + forward
# ----------------------------------------------------------------------------
def init_dirprior_params(key, k, channels, multiplier=0.5, dir_id="1"):
    mid = int(multiplier * channels)
    k1, k2, k3, k4 = jax.random.split(key, 4)
    # PyTorch Conv2d default init: U(-1/sqrt(fan_in), 1/sqrt(fan_in)).
    bound1 = 1.0 / math.sqrt(1.0)
    w1 = jax.random.uniform(k1, (mid, 1, 1, 1), jnp.float32, -bound1, bound1)
    b1 = jax.random.uniform(k2, (mid,), jnp.float32, -bound1, bound1)
    bound2 = 1.0 / math.sqrt(float(mid))
    w2 = jax.random.uniform(k3, (channels, mid, 1, 1), jnp.float32, -bound2, bound2)
    b2 = jax.random.uniform(k4, (channels,), jnp.float32, -bound2, bound2)
    return dict(
        position=jnp.asarray(dir_gen(dir_id, k)),   # (1, 1, k, k) constant buffer
        w1=w1, b1=b1, w2=w2, b2=b2, k=k, channels=channels,
    )


def dirprior_forward(params, x):
    """Matches DirPrior.forward: the input x is ignored by the reference module."""
    del x  # unused in the reference forward
    k = params["k"]
    C = params["channels"]
    pos_flat = params["position"].reshape(k * k)                       # row-major (k,k)
    out_cm = dirprior_fused(pos_flat, params["w1"], params["b1"],
                            params["w2"], params["b2"])                # (C, k*k)
    return out_cm.reshape(1, C, 1, k * k)


def _dirprior_reference(params):
    """Pure-JAX f32 reference for a numerical sanity check."""
    k = params["k"]
    C = params["channels"]
    mid = params["w1"].shape[0]
    pos = params["position"].reshape(1, k * k)                         # (1, M)
    h = jnp.maximum(params["w1"].reshape(mid, 1) * pos
                    + params["b1"].reshape(mid, 1), 0.0)               # (mid, M)
    out = params["w2"].reshape(C, mid) @ h + params["b2"].reshape(C, 1)
    return out.reshape(1, C, 1, k * k)


# ----------------------------------------------------------------------------
if __name__ == "__main__":
    K, CHANNELS, MULTIPLIER, DIR_ID, BATCH = 16, 32, 0.5, "1", 2

    key = jax.random.PRNGKey(0)
    kp, kx = jax.random.split(key)
    params = init_dirprior_params(kp, K, CHANNELS, MULTIPLIER, DIR_ID)

    # x is part of the module signature but unused by the reference forward.
    x = jax.random.normal(kx, (BATCH, CHANNELS, K, K), jnp.float32)

    out = dirprior_forward(params, x)
    out = jax.block_until_ready(out)

    assert out.shape == (1, CHANNELS, 1, K * K), out.shape
    assert bool(jnp.all(jnp.isfinite(out)))

    ref = _dirprior_reference(params)
    assert bool(jnp.allclose(out, ref, atol=5e-2, rtol=5e-2))

    print("KERNEL_OK")
</pallas_src>

<mosaic_0001>
module attributes {stable_mosaic.version = 11 : i64} {
  func.func @_dirprior_kernel(%arg0: i32, %arg1: memref<1x128xf32, #tpu.memory_space<vmem>>, %arg2: memref<128x1xf32, #tpu.memory_space<vmem>>, %arg3: memref<128x1xf32, #tpu.memory_space<vmem>>, %arg4: memref<128x128xbf16, #tpu.memory_space<vmem>>, %arg5: memref<128x1xf32, #tpu.memory_space<vmem>>, %arg6: memref<128x128xf32, #tpu.memory_space<vmem>>) attributes {dimension_semantics = [#tpu.dimension_semantics<parallel>], iteration_bounds = array<i64: 2>, scalar_prefetch = 0 : i64, scratch_operands = 0 : i64, tpu.core_type = #tpu.core_type<tc>, window_params = [{transform_indices = @transform_0, window_bounds = array<i64: 1, 128>}, {pipeline_mode = #tpu.pipeline_mode<synchronous>, transform_indices = @transform_1, window_bounds = array<i64: 128, 1>}, {pipeline_mode = #tpu.pipeline_mode<synchronous>, transform_indices = @transform_2, window_bounds = array<i64: 128, 1>}, {pipeline_mode = #tpu.pipeline_mode<synchronous>, transform_indices = @transform_3, window_bounds = array<i64: 128, 128>}, {pipeline_mode = #tpu.pipeline_mode<synchronous>, transform_indices = @transform_4, window_bounds = array<i64: 128, 1>}, {transform_indices = @transform_5, window_bounds = array<i64: 128, 128>}]} {
    %c0 = arith.constant 0 : index
    %c0_0 = arith.constant 0 : index
    %0 = vector.load %arg2[%c0, %c0_0] : memref<128x1xf32, #tpu.memory_space<vmem>>, vector<128x1xf32>
    %c0_1 = arith.constant 0 : index
    %c0_2 = arith.constant 0 : index
    %1 = vector.load %arg1[%c0_1, %c0_2] : memref<1x128xf32, #tpu.memory_space<vmem>>, vector<1x128xf32>
    %2 = vector.broadcast %0 : vector<128x1xf32> to vector<128x128xf32>
    %3 = vector.broadcast %1 : vector<1x128xf32> to vector<128x128xf32>
    %4 = arith.mulf %2, %3 : vector<128x128xf32>
    %c0_3 = arith.constant 0 : index
    %c0_4 = arith.constant 0 : index
    %5 = vector.load %arg3[%c0_3, %c0_4] : memref<128x1xf32, #tpu.memory_space<vmem>>, vector<128x1xf32>
    %6 = vector.broadcast %5 : vector<128x1xf32> to vector<128x128xf32>
    %7 = arith.addf %4, %6 : vector<128x128xf32>
    %cst = arith.constant 0.000000e+00 : f32
    %8 = vector.broadcast %cst : f32 to vector<128x128xf32>
    %9 = arith.maximumf %7, %8 : vector<128x128xf32>
    %c0_5 = arith.constant 0 : index
    %c0_6 = arith.constant 0 : index
    %10 = vector.load %arg4[%c0_5, %c0_6] : memref<128x128xbf16, #tpu.memory_space<vmem>>, vector<128x128xbf16>
    %11 = arith.truncf %9 : vector<128x128xf32> to vector<128x128xbf16>
    %cst_7 = arith.constant dense<0.000000e+00> : vector<128x128xf32>
    %12 = tpu.matmul %10, %11, %cst_7 {dimension_numbers = #tpu.dot_dimension_numbers<[1], [0], [0], [1], [0, 0, 1, 1], [], []>} : vector<128x128xbf16>, vector<128x128xbf16>, vector<128x128xf32> -> vector<128x128xf32>
    %c0_8 = arith.constant 0 : index
    %c0_9 = arith.constant 0 : index
    %13 = vector.load %arg5[%c0_8, %c0_9] : memref<128x1xf32, #tpu.memory_space<vmem>>, vector<128x1xf32>
    %14 = vector.broadcast %13 : vector<128x1xf32> to vector<128x128xf32>
    %15 = arith.addf %12, %14 : vector<128x128xf32>
    %c0_10 = arith.constant 0 : index
    %c0_11 = arith.constant 0 : index
    %16 = vector.load %arg6[%c0_10, %c0_11] : memref<128x128xf32, #tpu.memory_space<vmem>>, vector<128x128xf32>
    tpu.vector_store %arg6[%c0_10, %c0_11], %15 {strides = array<i32>} : memref<128x128xf32, #tpu.memory_space<vmem>>, vector<128x128xf32>,
    return
  }
  func.func @transform_0(%arg0: i32) -> (i32, i32) {
    %c0_i32 = arith.constant 0 : i32
    %c0_i32_0 = arith.constant 0 : i32
    return %c0_i32, %arg0 : i32, i32
  }
  func.func @transform_1(%arg0: i32) -> (i32, i32) {
    %c0_i32 = arith.constant 0 : i32
    %c0_i32_0 = arith.constant 0 : i32
    %c0_i32_1 = arith.constant 0 : i32
    return %c0_i32, %c0_i32_0 : i32, i32
  }
  func.func @transform_2(%arg0: i32) -> (i32, i32) {
    %c0_i32 = arith.constant 0 : i32
    %c0_i32_0 = arith.constant 0 : i32
    %c0_i32_1 = arith.constant 0 : i32
    return %c0_i32, %c0_i32_0 : i32, i32
  }
  func.func @transform_3(%arg0: i32) -> (i32, i32) {
    %c0_i32 = arith.constant 0 : i32
    %c0_i32_0 = arith.constant 0 : i32
    %c0_i32_1 = arith.constant 0 : i32
    return %c0_i32, %c0_i32_0 : i32, i32
  }
  func.func @transform_4(%arg0: i32) -> (i32, i32) {
    %c0_i32 = arith.constant 0 : i32
    %c0_i32_0 = arith.constant 0 : i32
    %c0_i32_1 = arith.constant 0 : i32
    return %c0_i32, %c0_i32_0 : i32, i32
  }
  func.func @transform_5(%arg0: i32) -> (i32, i32) {
    %c0_i32 = arith.constant 0 : i32
    %c0_i32_0 = arith.constant 0 : i32
    return %c0_i32, %arg0 : i32, i32
  }
}

</mosaic_0001>

<llo_original>
// kernel: tpu_custom_call.1
$region0: #{tpu_custom_call.1}
  #allocation0 [shape = 'u32[]', space=smem, size = 0x4, offset = 0x4, fixed_abs, tag = 'smem constant byte address 0x4 - core index']
  #allocation1 [shape = 'u32[144,128]{1,0:T(1,128)}', space=vmem, size = 0x12000, scoped, tag = 'internal scratch']
  %s0 = inlined_call_operand.vmem [shape: f32[1,256], index: 0, kind: input, shape index: {}]
  %s1 = inlined_call_operand.vmem [shape: f32[128,1], index: 1, kind: input, shape index: {}]
  %s2 = inlined_call_operand.vmem [shape: f32[128,1], index: 2, kind: input, shape index: {}]
  %s3 = inlined_call_operand.vmem [shape: bf16[128,128], index: 3, kind: input, shape index: {}]
  %s4 = inlined_call_operand.vmem [shape: f32[128,1], index: 4, kind: input, shape index: {}]
  %s5 = inlined_call_operand.hbm [shape: f32[128,256], index: 5, kind: output, shape index: {}]
  %s6 = sld [smem:[#allocation0]]
  $region53: #{tpu_custom_call.1} parent=0
    _
  %s8 = ssub.s32 1, %s6
  %s9 = scalar_select 0, %s8, %s6
  $region1: #{tpu_custom_call.1} parent=0
    #allocation2 [shape = 'u8[131072]{0}', space=vmem, size = 0x20000, scoped, tag = 'output window, operand 0']
    #allocation3 [shape = 's32[2]{0}', space=sflag, size = 0x8, scoped, tag = 'scoped memory for tpu_custom_call.1']
    %10 = vsyncpa [#allocation3], 0
    %s11 = scalar_lea.sflag [#allocation3], 1
    %12 = vsyncpa %s11, 0
    loop: start=0, step=1, limit=4
    $region2: #{tpu_custom_call.1} parent=1 // loop_pre_header
      _
    $region3: #{tpu_custom_call.1} parent=1 // loop_header
      %s14 = sphi 0, %s18
      %p15 = scmp.ge.s32.totalorder %s14, 4
      %s24 = sphi 0, %s26
      %s27 = sphi 0, %s24
      %s28 = sphi 0, %s27
      %s44 = sphi 0, %s28
      %s48 = sphi 0, %s48
      %s50 = sphi 0, %s48
      %s51 = sphi 0, %s50
      %s65 = sphi 0, %s51
      %s69 = sphi 0, %s69
      %s71 = sphi 0, %s69
      %s72 = sphi 0, %s71
      %s86 = sphi 0, %s72
      %s90 = sphi 0, %s90
      %s92 = sphi 0, %s90
      %s93 = sphi 0, %s92
      %s107 = sphi 0, %s93
      %s111 = sphi 0, %s111
      %s113 = sphi 0, %s111
      %s114 = sphi 0, %s113
      %s128 = sphi 0, %s114
      %s134 = sphi 0, %s136
      %s137 = sphi 0, %s134
      %s138 = sphi 0, %s137
      %s154 = sphi 0, %s138
    $region4: #{tpu_custom_call.1} parent=1 // loop_header_branch
      %17 = sbr.rel (%p15) target = $region8
    $region5: #{tpu_custom_call.1} parent=1 // loop_body
      %s19 = ssub.s32 %s14, 1
      %s20 = ssub.s32 %s14, 2
      %s21 = sadd.s32 %s14, 1
      %s22 = ssub.s32 %s14, %s21
      %p23 = scmp.eq.s32.totalorder %s22, 0
      %s25 = sadd.s32 %s24, 1
      %s26 = scalar_select %p23, %s24, %s25
      %p29 = pneg %p23
      %p30 = scmp.eq.s32.totalorder %s14, 1
      %p31 = por %p29, %p30
      %p32 = scmp.ne.s32.totalorder %s24, %s27
      %p33 = scmp.eq.s32.totalorder %s14, 0
      %p34 = por %p32, %p33
      %p35 = scmp.ne.s32.totalorder %s24, %s27
      %p36 = scmp.eq.s32.totalorder %s19, 1
      %p37 = por %p35, %p36
      %p38 = scmp.ne.s32.totalorder %s27, %s28
      %p39 = scmp.eq.s32.totalorder %s19, 0
      %p40 = por %p38, %p39
      %p41 = scmp.ne.s32.totalorder %s27, %s28
      %p42 = scmp.eq.s32.totalorder %s20, 1
      %p43 = por %p41, %p42
      %p45 = scmp.ne.s32.totalorder %s28, %s44
      %p46 = scmp.eq.s32.totalorder %s20, 0
      %p47 = por %p45, %p46
      %s49 = sadd.s32 %s48, 1
      %p52 = scmp.eq.s32.totalorder %s14, 1
      %p53 = scmp.ne.s32.totalorder %s48, %s50
      %p54 = scmp.eq.s32.totalorder %s14, 0
      %p55 = por %p53, %p54
      %p56 = scmp.ne.s32.totalorder %s48, %s50
      %p57 = scmp.eq.s32.totalorder %s19, 1
      %p58 = por %p56, %p57
      %p59 = scmp.ne.s32.totalorder %s50, %s51
      %p60 = scmp.eq.s32.totalorder %s19, 0
      %p61 = por %p59, %p60
      %p62 = scmp.ne.s32.totalorder %s50, %s51
      %p63 = scmp.eq.s32.totalorder %s20, 1
      %p64 = por %p62, %p63
      %p66 = scmp.ne.s32.totalorder %s51, %s65
      %p67 = scmp.eq.s32.totalorder %s20, 0
      %p68 = por %p66, %p67
      %s70 = sadd.s32 %s69, 1
      %p73 = scmp.eq.s32.totalorder %s14, 1
      %p74 = scmp.ne.s32.totalorder %s69, %s71
      %p75 = scmp.eq.s32.totalorder %s14, 0
      %p76 = por %p74, %p75
      %p77 = scmp.ne.s32.totalorder %s69, %s71
      %p78 = scmp.eq.s32.totalorder %s19, 1
      %p79 = por %p77, %p78
      %p80 = scmp.ne.s32.totalorder %s71, %s72
      %p81 = scmp.eq.s32.totalorder %s19, 0
      %p82 = por %p80, %p81
      %p83 = scmp.ne.s32.totalorder %s71, %s72
      %p84 = scmp.eq.s32.totalorder %s20, 1
      %p85 = por %p83, %p84
      %p87 = scmp.ne.s32.totalorder %s72, %s86
      %p88 = scmp.eq.s32.totalorder %s20, 0
      %p89 = por %p87, %p88
      %s91 = sadd.s32 %s90, 1
      %p94 = scmp.eq.s32.totalorder %s14, 1
      %p95 = scmp.ne.s32.totalorder %s90, %s92
      %p96 = scmp.eq.s32.totalorder %s14, 0
      %p97 = por %p95, %p96
      %p98 = scmp.ne.s32.totalorder %s90, %s92
      %p99 = scmp.eq.s32.totalorder %s19, 1
      %p100 = por %p98, %p99
      %p101 = scmp.ne.s32.totalorder %s92, %s93
      %p102 = scmp.eq.s32.totalorder %s19, 0
      %p103 = por %p101, %p102
      %p104 = scmp.ne.s32.totalorder %s92, %s93
      %p105 = scmp.eq.s32.totalorder %s20, 1
      %p106 = por %p104, %p105
      %p108 = scmp.ne.s32.totalorder %s93, %s107
      %p109 = scmp.eq.s32.totalorder %s20, 0
      %p110 = por %p108, %p109
      %s112 = sadd.s32 %s111, 1
      %p115 = scmp.eq.s32.totalorder %s14, 1
      %p116 = scmp.ne.s32.totalorder %s111, %s113
      %p117 = scmp.eq.s32.totalorder %s14, 0
      %p118 = por %p116, %p117
      %p119 = scmp.ne.s32.totalorder %s111, %s113
      %p120 = scmp.eq.s32.totalorder %s19, 1
      %p121 = por %p119, %p120
      %p122 = scmp.ne.s32.totalorder %s113, %s114
      %p123 = scmp.eq.s32.totalorder %s19, 0
      %p124 = por %p122, %p123
      %p125 = scmp.ne.s32.totalorder %s113, %s114
      %p126 = scmp.eq.s32.totalorder %s20, 1
      %p127 = por %p125, %p126
      %p129 = scmp.ne.s32.totalorder %s114, %s128
      %p130 = scmp.eq.s32.totalorder %s20, 0
      %p131 = por %p129, %p130
      %s132 = ssub.s32 %s14, %s21
      %p133 = scmp.eq.s32.totalorder %s132, 0
      %s135 = sadd.s32 %s134, 1
      %s136 = scalar_select %p133, %s134, %s135
      %p139 = pneg %p133
      %p140 = scmp.eq.s32.totalorder %s14, 1
      %p141 = por %p139, %p140
      %p142 = scmp.ne.s32.totalorder %s134, %s137
      %p143 = scmp.eq.s32.totalorder %s14, 0
      %p144 = por %p142, %p143
      %p145 = scmp.ne.s32.totalorder %s134, %s137
      %p146 = scmp.eq.s32.totalorder %s19, 1
      %p147 = por %p145, %p146
      %p148 = scmp.ne.s32.totalorder %s137, %s138
      %p149 = scmp.eq.s32.totalorder %s19, 0
      %p150 = por %p148, %p149
      %p151 = scmp.ne.s32.totalorder %s137, %s138
      %p152 = scmp.eq.s32.totalorder %s20, 1
      %p153 = por %p151, %p152
      %p155 = scmp.ne.s32.totalorder %s138, %s154
      %p156 = scmp.eq.s32.totalorder %s20, 0
      %p157 = por %p155, %p156
      %p158 = scmp.le.s32.totalorder 1, %s14
      %p159 = scmp.lt.s32.totalorder %s14, 3
      %p160 = pnand %p158, %p159
      %p161 = pneg %p160
      // Predicated region
      $region9: #{tpu_custom_call.1} parent=5 // pred_check
        _
      $region10: #{tpu_custom_call.1} parent=5 // pred_check_branch
        %163 = sbr.rel (%p160) target = $region12
      $region11: #{tpu_custom_call.1} parent=5 // pred_region
        %s164 = ssub.s32 %s14, 1
        // Predicated region
        $region13: #{tpu_custom_call.1} parent=11 // pred_check
          %p165 = pneg %p61
        $region14: #{tpu_custom_call.1} parent=11 // pred_check_branch
          %167 = sbr.rel (%p165) target = $region16
        $region15: #{tpu_custom_call.1} parent=11 // pred_region
          _
        $region16: #{tpu_custom_call.1} parent=11 // pred_fallthru
          _
        // Predicated region
        $region17: #{tpu_custom_call.1} parent=11 // pred_check
          %p168 = pneg %p82
        $region18: #{tpu_custom_call.1} parent=11 // pred_check_branch
          %170 = sbr.rel (%p168) target = $region20
        $region19: #{tpu_custom_call.1} parent=11 // pred_region
          _
        $region20: #{tpu_custom_call.1} parent=11 // pred_fallthru
          _
        // Predicated region
        $region21: #{tpu_custom_call.1} parent=11 // pred_check
          %p171 = pneg %p103
        $region22: #{tpu_custom_call.1} parent=11 // pred_check_branch
          %173 = sbr.rel (%p171) target = $region24
        $region23: #{tpu_custom_call.1} parent=11 // pred_region
          _
        $region24: #{tpu_custom_call.1} parent=11 // pred_fallthru
          _
        // Predicated region
        $region25: #{tpu_custom_call.1} parent=11 // pred_check
          %p174 = pneg %p124
        $region26: #{tpu_custom_call.1} parent=11 // pred_check_branch
          %176 = sbr.rel (%p174) target = $region28
        $region27: #{tpu_custom_call.1} parent=11 // pred_region
          _
        $region28: #{tpu_custom_call.1} parent=11 // pred_fallthru
          _
      $region12: #{tpu_custom_call.1} parent=5 // pred_fallthru
        _
      %p177 = scmp.lt.s32.totalorder %s14, 2
      // Predicated region
      $region29: #{tpu_custom_call.1} parent=5 // pred_check
        %p178 = pneg %p177
      $region30: #{tpu_custom_call.1} parent=5 // pred_check_branch
        %180 = sbr.rel (%p178) target = $region32
      $region31: #{tpu_custom_call.1} parent=5 // pred_region
        // Predicated region
        $region33: #{tpu_custom_call.1} parent=31 // pred_check
          %p181 = pneg %p34
        $region34: #{tpu_custom_call.1} parent=31 // pred_check_branch
          %183 = sbr.rel (%p181) target = $region36
        $region35: #{tpu_custom_call.1} parent=31 // pred_region
          %p184 = scmp.lt.s32.totalorder %s14, 1
          %s185 = scalar_select %p184, %s14, 1
          %s186 = scalar_lea.vmem %s0, %s185
        $region36: #{tpu_custom_call.1} parent=31 // pred_fallthru
          _
      $region32: #{tpu_custom_call.1} parent=5 // pred_fallthru
        _
      %p187 = scmp.le.s32.totalorder 1, %s14
      %p188 = scmp.lt.s32.totalorder %s14, 3
      %p189 = pnand %p187, %p188
      %p190 = pneg %p189
      // Predicated region
      $region37: #{tpu_custom_call.1} parent=5 // pred_check
        _
      $region38: #{tpu_custom_call.1} parent=5 // pred_check_branch
        %192 = sbr.rel (%p189) target = $region40
      $region39: #{tpu_custom_call.1} parent=5 // pred_region
        %s193 = ssub.s32 %s14, 1
        %p194 = scmp.lt.s32.totalorder %s19, 1
        %s195 = scalar_select %p194, %s19, 1
        %s196 = scalar_lea.vmem %s0, %s195
        %p197 = pneg %p40
        %p198 = pneg %p37
        %p199 = pneg %p61
        %p200 = pneg %p58
        %p201 = pneg %p82
        %p202 = pneg %p79
        %p203 = pneg %p103
        %p204 = pneg %p100
        %p205 = pneg %p124
        %p206 = pneg %p121
        %p207 = pneg %p150
        %p208 = pneg %p147
        %s209 = sand.u32 %s137, 1
        %s210 = scalar_lea.sflag [#allocation3], %s209
        %s211 = sand.u32 %s137, 1
        %s212 = smul.addr %s211, 128
        %s213 = scalar_lea.vmem [#allocation2], %s212
        %p214 = scmp.lt.s32.totalorder %s19, 1
        %s215 = scalar_select %p214, %s19, 1
        %s216 = scalar_lea.vmem %s0, %s215
        %v218 = vld [vmem:[%s1] sm:$0xff]
        %v219 = vld [vmem:[%s1 + $0x8] sm:$0xff]
        %v220 = vld [vmem:[%s1 + $0x10] sm:$0xff]
        %v221 = vld [vmem:[%s1 + $0x18] sm:$0xff]
        %v222 = vld [vmem:[%s1 + $0x20] sm:$0xff]
        %v223 = vld [vmem:[%s1 + $0x28] sm:$0xff]
        %v224 = vld [vmem:[%s1 + $0x30] sm:$0xff]
        %v225 = vld [vmem:[%s1 + $0x38] sm:$0xff]
        %v226 = vld [vmem:[%s1 + $0x40] sm:$0xff]
        %v227 = vld [vmem:[%s1 + $0x48] sm:$0xff]
        %v228 = vld [vmem:[%s1 + $0x50] sm:$0xff]
        %v229 = vld [vmem:[%s1 + $0x58] sm:$0xff]
        %v230 = vld [vmem:[%s1 + $0x60] sm:$0xff]
        %v231 = vld [vmem:[%s1 + $0x68] sm:$0xff]
        %v232 = vld [vmem:[%s1 + $0x70] sm:$0xff]
        %v233 = vld [vmem:[%s1 + $0x78] sm:$0xff]
        %v234 = vld [vmem:[%s216] sm:$0x1]
        %236 = vset.pattern.permute.xlu0 0
        %237 = vperm.xlu0 %236, %v218
        %v238 = vpop.permute.xlu0 %237
        %241 = vset.pattern.permute.xlu0 0
        %242 = vperm.xlu0 %241, %v219
        %v243 = vpop.permute.xlu0 %242
        %246 = vset.pattern.permute.xlu0 0
        %247 = vperm.xlu0 %246, %v220
        %v248 = vpop.permute.xlu0 %247
        %251 = vset.pattern.permute.xlu0 0
        %252 = vperm.xlu0 %251, %v221
        %v253 = vpop.permute.xlu0 %252
        %256 = vset.pattern.permute.xlu0 0
        %257 = vperm.xlu0 %256, %v222
        %v258 = vpop.permute.xlu0 %257
        %261 = vset.pattern.permute.xlu0 0
        %262 = vperm.xlu0 %261, %v223
        %v263 = vpop.permute.xlu0 %262
        %266 = vset.pattern.permute.xlu0 0
        %267 = vperm.xlu0 %266, %v224
        %v268 = vpop.permute.xlu0 %267
        %271 = vset.pattern.permute.xlu0 0
        %272 = vperm.xlu0 %271, %v225
        %v273 = vpop.permute.xlu0 %272
        %276 = vset.pattern.permute.xlu0 0
        %277 = vperm.xlu0 %276, %v226
        %v278 = vpop.permute.xlu0 %277
        %281 = vset.pattern.permute.xlu0 0
        %282 = vperm.xlu0 %281, %v227
        %v283 = vpop.permute.xlu0 %282
        %286 = vset.pattern.permute.xlu0 0
        %287 = vperm.xlu0 %286, %v228
        %v288 = vpop.permute.xlu0 %287
        %291 = vset.pattern.permute.xlu0 0
        %292 = vperm.xlu0 %291, %v229
        %v293 = vpop.permute.xlu0 %292
        %296 = vset.pattern.permute.xlu0 0
        %297 = vperm.xlu0 %296, %v230
        %v298 = vpop.permute.xlu0 %297
        %301 = vset.pattern.permute.xlu0 0
        %302 = vperm.xlu0 %301, %v231
        %v303 = vpop.permute.xlu0 %302
        %306 = vset.pattern.permute.xlu0 0
        %307 = vperm.xlu0 %306, %v232
        %v308 = vpop.permute.xlu0 %307
        %311 = vset.pattern.permute.xlu0 0
        %312 = vperm.xlu0 %311, %v233
        %v313 = vpop.permute.xlu0 %312
        %v316 = vlaneseq
        %v317 = vshrl.u32 %v316, 7
        %v318 = vsub.s32 0, %v317
        %v319 = vrot.slane %v234, %v318
        %v321 = vmul.f32 %v238, %v319
        %v322 = vmul.f32 %v243, %v319
        %v323 = vmul.f32 %v248, %v319
        %v324 = vmul.f32 %v253, %v319
        %v325 = vmul.f32 %v258, %v319
        %v326 = vmul.f32 %v263, %v319
        %v327 = vmul.f32 %v268, %v319
        %v328 = vmul.f32 %v273, %v319
        %v329 = vmul.f32 %v278, %v319
        %v330 = vmul.f32 %v283, %v319
        %v331 = vmul.f32 %v288, %v319
        %v332 = vmul.f32 %v293, %v319
        %v333 = vmul.f32 %v298, %v319
        %v334 = vmul.f32 %v303, %v319
        %v335 = vmul.f32 %v308, %v319
        %v336 = vmul.f32 %v313, %v319
        %v337 = vld [vmem:[%s2] sm:$0xff]
        %v338 = vld [vmem:[%s2 + $0x8] sm:$0xff]
        %v339 = vld [vmem:[%s2 + $0x10] sm:$0xff]
        %v340 = vld [vmem:[%s2 + $0x18] sm:$0xff]
        %v341 = vld [vmem:[%s2 + $0x20] sm:$0xff]
        %v342 = vld [vmem:[%s2 + $0x28] sm:$0xff]
        %v343 = vld [vmem:[%s2 + $0x30] sm:$0xff]
        %v344 = vld [vmem:[%s2 + $0x38] sm:$0xff]
        %v345 = vld [vmem:[%s2 + $0x40] sm:$0xff]
        %v346 = vld [vmem:[%s2 + $0x48] sm:$0xff]
        %v347 = vld [vmem:[%s2 + $0x50] sm:$0xff]
        %v348 = vld [vmem:[%s2 + $0x58] sm:$0xff]
        %v349 = vld [vmem:[%s2 + $0x60] sm:$0xff]
        %v350 = vld [vmem:[%s2 + $0x68] sm:$0xff]
        %v351 = vld [vmem:[%s2 + $0x70] sm:$0xff]
        %v352 = vld [vmem:[%s2 + $0x78] sm:$0xff]
        %354 = vset.pattern.permute.xlu0 0
        %355 = vperm.xlu0 %354, %v337
        %v356 = vpop.permute.xlu0 %355
        %359 = vset.pattern.permute.xlu0 0
        %360 = vperm.xlu0 %359, %v338
        %v361 = vpop.permute.xlu0 %360
        %364 = vset.pattern.permute.xlu0 0
        %365 = vperm.xlu0 %364, %v339
        %v366 = vpop.permute.xlu0 %365
        %369 = vset.pattern.permute.xlu0 0
        %370 = vperm.xlu0 %369, %v340
        %v371 = vpop.permute.xlu0 %370
        %374 = vset.pattern.permute.xlu0 0
        %375 = vperm.xlu0 %374, %v341
        %v376 = vpop.permute.xlu0 %375
        %379 = vset.pattern.permute.xlu0 0
        %380 = vperm.xlu0 %379, %v342
        %v381 = vpop.permute.xlu0 %380
        %384 = vset.pattern.permute.xlu0 0
        %385 = vperm.xlu0 %384, %v343
        %v386 = vpop.permute.xlu0 %385
        %389 = vset.pattern.permute.xlu0 0
        %390 = vperm.xlu0 %389, %v344
        %v391 = vpop.permute.xlu0 %390
        %394 = vset.pattern.permute.xlu0 0
        %395 = vperm.xlu0 %394, %v345
        %v396 = vpop.permute.xlu0 %395
        %399 = vset.pattern.permute.xlu0 0
        %400 = vperm.xlu0 %399, %v346
        %v401 = vpop.permute.xlu0 %400
        %404 = vset.pattern.permute.xlu0 0
        %405 = vperm.xlu0 %404, %v347
        %v406 = vpop.permute.xlu0 %405
        %409 = vset.pattern.permute.xlu0 0
        %410 = vperm.xlu0 %409, %v348
        %v411 = vpop.permute.xlu0 %410
        %414 = vset.pattern.permute.xlu0 0
        %415 = vperm.xlu0 %414, %v349
        %v416 = vpop.permute.xlu0 %415
        %419 = vset.pattern.permute.xlu0 0
        %420 = vperm.xlu0 %419, %v350
        %v421 = vpop.permute.xlu0 %420
        %424 = vset.pattern.permute.xlu0 0
        %425 = vperm.xlu0 %424, %v351
        %v426 = vpop.permute.xlu0 %425
        %429 = vset.pattern.permute.xlu0 0
        %430 = vperm.xlu0 %429, %v352
        %v431 = vpop.permute.xlu0 %430
        %v433 = vadd.f32 %v321, %v356
        %v434 = vadd.f32 %v322, %v361
        %v435 = vadd.f32 %v323, %v366
        %v436 = vadd.f32 %v324, %v371
        %v437 = vadd.f32 %v325, %v376
        %v438 = vadd.f32 %v326, %v381
        %v439 = vadd.f32 %v327, %v386
        %v440 = vadd.f32 %v328, %v391
        %v441 = vadd.f32 %v329, %v396
        %v442 = vadd.f32 %v330, %v401
        %v443 = vadd.f32 %v331, %v406
        %v444 = vadd.f32 %v332, %v411
        %v445 = vadd.f32 %v333, %v416
        %v446 = vadd.f32 %v334, %v421
        %v447 = vadd.f32 %v335, %v426
        %v448 = vadd.f32 %v336, %v431
        %v449 = vmax.f32 %v433, 0.0
        %v450 = vmax.f32 %v434, 0.0
        %v451 = vmax.f32 %v435, 0.0
        %v452 = vmax.f32 %v436, 0.0
        %v453 = vmax.f32 %v437, 0.0
        %v454 = vmax.f32 %v438, 0.0
        %v455 = vmax.f32 %v439, 0.0
        %v456 = vmax.f32 %v440, 0.0
        %v457 = vmax.f32 %v441, 0.0
        %v458 = vmax.f32 %v442, 0.0
        %v459 = vmax.f32 %v443, 0.0
        %v460 = vmax.f32 %v444, 0.0
        %v461 = vmax.f32 %v445, 0.0
        %v462 = vmax.f32 %v446, 0.0
        %v463 = vmax.f32 %v447, 0.0
        %v464 = vmax.f32 %v448, 0.0
        %v465 = vld [vmem:[%s3] sm:$0xf]
        %v466 = vld [vmem:[%s3 + $0x4] sm:$0xf]
        %v467 = vld [vmem:[%s3 + $0x8] sm:$0xf]
        %v468 = vld [vmem:[%s3 + $0xc] sm:$0xf]
        %v469 = vld [vmem:[%s3 + $0x10] sm:$0xf]
        %v470 = vld [vmem:[%s3 + $0x14] sm:$0xf]
        %v471 = vld [vmem:[%s3 + $0x18] sm:$0xf]
        %v472 = vld [vmem:[%s3 + $0x1c] sm:$0xf]
        %v473 = vld [vmem:[%s3 + $0x20] sm:$0xf]
        %v474 = vld [vmem:[%s3 + $0x24] sm:$0xf]
        %v475 = vld [vmem:[%s3 + $0x28] sm:$0xf]
        %v476 = vld [vmem:[%s3 + $0x2c] sm:$0xf]
        %v477 = vld [vmem:[%s3 + $0x30] sm:$0xf]
        %v478 = vld [vmem:[%s3 + $0x34] sm:$0xf]
        %v479 = vld [vmem:[%s3 + $0x38] sm:$0xf]
        %v480 = vld [vmem:[%s3 + $0x3c] sm:$0xf]
        %v481 = vpack.c.bf16 %v450, %v449
        %v482 = vpack.c.bf16 %v452, %v451
        %v483 = vpack.c.bf16 %v454, %v453
        %v484 = vpack.c.bf16 %v456, %v455
        %v485 = vpack.c.bf16 %v458, %v457
        %v486 = vpack.c.bf16 %v460, %v459
        %v487 = vpack.c.bf16 %v462, %v461
        %v488 = vpack.c.bf16 %v464, %v463
        %v489 = vld [vmem:[%s4] sm:$0xff]
        %v490 = vld [vmem:[%s4 + $0x8] sm:$0xff]
        %v491 = vld [vmem:[%s4 + $0x10] sm:$0xff]
        %v492 = vld [vmem:[%s4 + $0x18] sm:$0xff]
        %v493 = vld [vmem:[%s4 + $0x20] sm:$0xff]
        %v494 = vld [vmem:[%s4 + $0x28] sm:$0xff]
        %v495 = vld [vmem:[%s4 + $0x30] sm:$0xff]
        %v496 = vld [vmem:[%s4 + $0x38] sm:$0xff]
        %v497 = vld [vmem:[%s4 + $0x40] sm:$0xff]
        %v498 = vld [vmem:[%s4 + $0x48] sm:$0xff]
        %v499 = vld [vmem:[%s4 + $0x50] sm:$0xff]
        %v500 = vld [vmem:[%s4 + $0x58] sm:$0xff]
        %v501 = vld [vmem:[%s4 + $0x60] sm:$0xff]
        %v502 = vld [vmem:[%s4 + $0x68] sm:$0xff]
        %v503 = vld [vmem:[%s4 + $0x70] sm:$0xff]
        %v504 = vld [vmem:[%s4 + $0x78] sm:$0xff]
        %506 = vset.pattern.permute.xlu0 0
        %507 = vperm.xlu0 %506, %v489
        %v508 = vpop.permute.xlu0 %507
        %511 = vset.pattern.permute.xlu0 0
        %512 = vperm.xlu0 %511, %v490
        %v513 = vpop.permute.xlu0 %512
        %516 = vset.pattern.permute.xlu0 0
        %517 = vperm.xlu0 %516, %v491
        %v518 = vpop.permute.xlu0 %517
        %521 = vset.pattern.permute.xlu0 0
        %522 = vperm.xlu0 %521, %v492
        %v523 = vpop.permute.xlu0 %522
        %526 = vset.pattern.permute.xlu0 0
        %527 = vperm.xlu0 %526, %v493
        %v528 = vpop.permute.xlu0 %527
        %531 = vset.pattern.permute.xlu0 0
        %532 = vperm.xlu0 %531, %v494
        %v533 = vpop.permute.xlu0 %532
        %536 = vset.pattern.permute.xlu0 0
        %537 = vperm.xlu0 %536, %v495
        %v538 = vpop.permute.xlu0 %537
        %541 = vset.pattern.permute.xlu0 0
        %542 = vperm.xlu0 %541, %v496
        %v543 = vpop.permute.xlu0 %542
        %546 = vset.pattern.permute.xlu0 0
        %547 = vperm.xlu0 %546, %v497
        %v548 = vpop.permute.xlu0 %547
        %551 = vset.pattern.permute.xlu0 0
        %552 = vperm.xlu0 %551, %v498
        %v553 = vpop.permute.xlu0 %552
        %556 = vset.pattern.permute.xlu0 0
        %557 = vperm.xlu0 %556, %v499
        %v558 = vpop.permute.xlu0 %557
        %561 = vset.pattern.permute.xlu0 0
        %562 = vperm.xlu0 %561, %v500
        %v563 = vpop.permute.xlu0 %562
        %566 = vset.pattern.permute.xlu0 0
        %567 = vperm.xlu0 %566, %v501
        %v568 = vpop.permute.xlu0 %567
        %571 = vset.pattern.permute.xlu0 0
        %572 = vperm.xlu0 %571, %v502
        %v573 = vpop.permute.xlu0 %572
        %576 = vset.pattern.permute.xlu0 0
        %577 = vperm.xlu0 %576, %v503
        %v578 = vpop.permute.xlu0 %577
        %581 = vset.pattern.permute.xlu0 0
        %582 = vperm.xlu0 %581, %v504
        %v583 = vpop.permute.xlu0 %582
        %v601 = vunpack.c.l.b16 %v465
        %v602 = vunpack.c.l.b16 %v466
        %v603 = vunpack.c.l.b16 %v467
        %v604 = vunpack.c.l.b16 %v468
        %v605 = vunpack.c.l.b16 %v469
        %v606 = vunpack.c.l.b16 %v470
        %v607 = vunpack.c.l.b16 %v471
        %v608 = vunpack.c.l.b16 %v472
        %v609 = vunpack.c.l.b16 %v473
        %v610 = vunpack.c.l.b16 %v474
        %v611 = vunpack.c.l.b16 %v475
        %v612 = vunpack.c.l.b16 %v476
        %v613 = vunpack.c.l.b16 %v477
        %v614 = vunpack.c.l.b16 %v478
        %v615 = vunpack.c.l.b16 %v479
        %v616 = vunpack.c.l.b16 %v480
        %v617 = vpack.c.b16 %v602, %v601
        %v618 = vpack.c.b16 %v604, %v603
        %v619 = vpack.c.b16 %v606, %v605
        %v620 = vpack.c.b16 %v608, %v607
        %v621 = vpack.c.b16 %v610, %v609
        %v622 = vpack.c.b16 %v612, %v611
        %v623 = vpack.c.b16 %v614, %v613
        %v624 = vpack.c.b16 %v616, %v615
        %633 = vmatprep.subr.bf16.mxu0 0
        %634 = vmatpush1.bf16.msra.mxu0 %v481
        %635 = vmatprep.subr.bf16.mxu0 0
        %636 = vmatpush1.bf16.msra.mxu0 %v482
        %637 = vmatprep.subr.bf16.mxu0 0
        %638 = vmatpush1.bf16.msra.mxu0 %v483
        %639 = vmatprep.subr.bf16.mxu0 0
        %640 = vmatpush1.bf16.msra.mxu0 %v484
        %641 = vmatprep.subr.bf16.mxu0 0
        %642 = vmatpush1.bf16.msra.mxu0 %v485
        %643 = vmatprep.subr.bf16.mxu0 0
        %644 = vmatpush1.bf16.msra.mxu0 %v486
        %645 = vmatprep.subr.bf16.mxu0 0
        %646 = vmatpush1.bf16.msra.mxu0 %v487
        %647 = vmatprep.subr.bf16.mxu0 0
        %648 = vmatpush1.bf16.msra.mxu0 %v488
        %649 = vmatprep.subr.bf16.mxu0 0
        %650 = vmatpush1.bf16.msra.mxu0 0
        %651 = vmatprep.subr.bf16.mxu0 0
        %652 = vmatpush1.bf16.msra.mxu0 0
        %653 = vmatprep.subr.bf16.mxu0 0
        %654 = vmatpush1.bf16.msra.mxu0 0
        %655 = vmatprep.subr.bf16.mxu0 0
        %656 = vmatpush1.bf16.msra.mxu0 0
        %657 = vmatprep.subr.bf16.mxu0 0
        %658 = vmatpush1.bf16.msra.mxu0 0
        %659 = vmatprep.subr.bf16.mxu0 0
        %660 = vmatpush1.bf16.msra.mxu0 0
        %661 = vmatprep.subr.bf16.mxu0 0
        %662 = vmatpush1.bf16.msra.mxu0 0
        %663 = vmatprep.subr.bf16.mxu0 0
        %664 = vmatpush1.bf16.msra.mxu0 0
        %665 = vmatprep.mubr.bf16.mxu0 0
        %666 = vmatmul.mubr.bf16.gmra.mrb[0].mxu0 %v617
        %v667 = vpop.f32.mrb[0].mxu0
        %v668 = vadd.f32 %v508, %v667
        %v669 = vpop.f32.mrb[0].mxu0
        %v670 = vpop.f32.mrb[0].mxu0
        %v671 = vadd.f32 %v513, %v670
        %v672 = vpop.f32.mrb[0].mxu0
        %673 = vmatprep.mubr.bf16.mxu0 0
        %674 = vmatmul.mubr.bf16.gmra.mrb[0].mxu0 %v618
        %v675 = vpop.f32.mrb[0].mxu0
        %v676 = vadd.f32 %v518, %v675
        %v677 = vpop.f32.mrb[0].mxu0
        %v678 = vpop.f32.mrb[0].mxu0
        %v679 = vadd.f32 %v523, %v678
        %v680 = vpop.f32.mrb[0].mxu0
        %681 = vmatprep.mubr.bf16.mxu0 0
        %682 = vmatmul.mubr.bf16.gmra.mrb[0].mxu0 %v619
        %v683 = vpop.f32.mrb[0].mxu0
        %v684 = vadd.f32 %v528, %v683
        %v685 = vpop.f32.mrb[0].mxu0
        %v686 = vpop.f32.mrb[0].mxu0
        %v687 = vadd.f32 %v533, %v686
        %v688 = vpop.f32.mrb[0].mxu0
        %689 = vmatprep.mubr.bf16.mxu0 0
        %690 = vmatmul.mubr.bf16.gmra.mrb[0].mxu0 %v620
        %v691 = vpop.f32.mrb[0].mxu0
        %v692 = vadd.f32 %v538, %v691
        %v693 = vpop.f32.mrb[0].mxu0
        %v694 = vpop.f32.mrb[0].mxu0
        %v695 = vadd.f32 %v543, %v694
        %v696 = vpop.f32.mrb[0].mxu0
        %697 = vmatprep.mubr.bf16.mxu0 0
        %698 = vmatmul.mubr.bf16.gmra.mrb[0].mxu0 %v621
        %v699 = vpop.f32.mrb[0].mxu0
        %v700 = vadd.f32 %v548, %v699
        %v701 = vpop.f32.mrb[0].mxu0
        %v702 = vpop.f32.mrb[0].mxu0
        %v703 = vadd.f32 %v553, %v702
        %v704 = vpop.f32.mrb[0].mxu0
        %705 = vmatprep.mubr.bf16.mxu0 0
        %706 = vmatmul.mubr.bf16.gmra.mrb[0].mxu0 %v622
        %v707 = vpop.f32.mrb[0].mxu0
        %v708 = vadd.f32 %v558, %v707
        %v709 = vpop.f32.mrb[0].mxu0
        %v710 = vpop.f32.mrb[0].mxu0
        %v711 = vadd.f32 %v563, %v710
        %v712 = vpop.f32.mrb[0].mxu0
        %713 = vmatprep.mubr.bf16.mxu0 0
        %714 = vmatmul.mubr.bf16.gmra.mrb[0].mxu0 %v623
        %v715 = vpop.f32.mrb[0].mxu0
        %v716 = vadd.f32 %v568, %v715
        %v717 = vpop.f32.mrb[0].mxu0
        %v718 = vpop.f32.mrb[0].mxu0
        %v719 = vadd.f32 %v573, %v718
        %v720 = vpop.f32.mrb[0].mxu0
        %721 = vmatprep.mubr.bf16.mxu0 0
        %722 = vmatmul.mubr.bf16.gmra.mrb[0].mxu0 %v624
        %v723 = vpop.f32.mrb[0].mxu0
        %v724 = vadd.f32 %v578, %v723
        %v725 = vpop.f32.mrb[0].mxu0
        %v726 = vpop.f32.mrb[0].mxu0
        %v727 = vadd.f32 %v583, %v726
        %v728 = vpop.f32.mrb[0].mxu0
        %729 = vdwg.mxu0
        %730 = vst [vmem:[%s213] sm:$0xff] %v668
        %731 = vst [vmem:[%s213 + $0x8] sm:$0xff] %v671
        %732 = vst [vmem:[%s213 + $0x10] sm:$0xff] %v676
        %733 = vst [vmem:[%s213 + $0x18] sm:$0xff] %v679
        %734 = vst [vmem:[%s213 + $0x20] sm:$0xff] %v684
        %735 = vst [vmem:[%s213 + $0x28] sm:$0xff] %v687
        %736 = vst [vmem:[%s213 + $0x30] sm:$0xff] %v692
        %737 = vst [vmem:[%s213 + $0x38] sm:$0xff] %v695
        %738 = vst [vmem:[%s213 + $0x40] sm:$0xff] %v700
        %739 = vst [vmem:[%s213 + $0x48] sm:$0xff] %v703
        %740 = vst [vmem:[%s213 + $0x50] sm:$0xff] %v708
        %741 = vst [vmem:[%s213 + $0x58] sm:$0xff] %v711
        %742 = vst [vmem:[%s213 + $0x60] sm:$0xff] %v716
        %743 = vst [vmem:[%s213 + $0x68] sm:$0xff] %v719
        %744 = vst [vmem:[%s213 + $0x70] sm:$0xff] %v724
        %745 = vst [vmem:[%s213 + $0x78] sm:$0xff] %v727
        %s746 = sand.u32 %s137, 1
        %s747 = scalar_lea.sflag [#allocation3], %s746
        %s748 = sand.u32 %s137, 1
        %s749 = smul.addr %s748, 128
        %s750 = scalar_lea.vmem [#allocation2], %s749
        // Predicated region
        $region41: #{tpu_custom_call.1} parent=39 // pred_check
          %p751 = pneg %p147
        $region42: #{tpu_custom_call.1} parent=39 // pred_check_branch
          %753 = sbr.rel (%p751) target = $region44
        $region43: #{tpu_custom_call.1} parent=39 // pred_region
          %s755 = ssub.s32 2048, 2048
          %756 = vsyncadd %s747, %s755
          %s757 = smul.addr %s19, 128
          %s758 = scalar_lea.hbm %s5, %s757
          %s759 = sshll.u32 %s750, 4
          %s760 = int_to_ptr.vmem [resolvable:$true] %s759
          %765 = dma.vmem_to_hbm [thread:$0]  %s760, 2048, %s758, %s747, 128, 256, 8
        $region44: #{tpu_custom_call.1} parent=39 // pred_fallthru
          _
      $region40: #{tpu_custom_call.1} parent=5 // pred_fallthru
        _
      %p766 = scmp.le.s32.totalorder 2, %s14
      // Predicated region
      $region45: #{tpu_custom_call.1} parent=5 // pred_check
        %p767 = pneg %p766
      $region46: #{tpu_custom_call.1} parent=5 // pred_check_branch
        %769 = sbr.rel (%p767) target = $region48
      $region47: #{tpu_custom_call.1} parent=5 // pred_region
        %s770 = ssub.s32 %s14, 2
        // Predicated region
        $region49: #{tpu_custom_call.1} parent=47 // pred_check
          %p771 = pneg %p153
        $region50: #{tpu_custom_call.1} parent=47 // pred_check_branch
          %773 = sbr.rel (%p771) target = $region52
        $region51: #{tpu_custom_call.1} parent=47 // pred_region
          %s774 = sand.u32 %s138, 1
          %s775 = scalar_lea.sflag [#allocation3], %s774
          %s776 = sand.u32 %s138, 1
          %s777 = smul.addr %s776, 128
          %s778 = scalar_lea.vmem [#allocation2], %s777
          %779 = dma.done %s775, 2048
        $region52: #{tpu_custom_call.1} parent=47 // pred_fallthru
          _
      $region48: #{tpu_custom_call.1} parent=5 // pred_fallthru
        _
    $region6: #{tpu_custom_call.1} parent=1 // loop_footer
      %s18 = sadd.s32 1, %s14
    $region7: #{tpu_custom_call.1} parent=1 // loop_footer_branch
      %13 = sbr.rel target = $region3
    $region8: #{tpu_custom_call.1} parent=1 // loop_exit
      _
    %780 = vsyncpa [#allocation3], 1
    %s781 = scalar_lea.sflag [#allocation3], 1
    %782 = vsyncpa %s781, 1

</llo_original>
